<compile_context>
chip_gen: v7x
topology: tpu7x:2x2x1
jax: 0.10.0
libtpu: 0.0.40
codegen_flags: <defaults>
</compile_context>

<pallas_src>
import functools
import math

import jax
import jax.numpy as jnp
from jax.experimental import pallas as pl
from jax.experimental.pallas import tpu as pltpu


def _decoder_kernel(y_ref, w_ref, hc_ref, fc_ref, out_ref, *,
                    seq_len, hidden_size, matmul_dtype):
    """Single-program kernel: T-step LSTM recurrence (input_size=1) + final Linear.

    y_ref  : (T, B, 1)      shifted target, one leading index per timestep
    w_ref  : (H+2, 4H)      rows [0:H] = w_hh.T (gate-fused), row H = w_ih.T, row H+1 = b_ih+b_hh
    hc_ref : (2, B, H)      initial (h, c)
    fc_ref : (H+1, O_pad)   rows [0:H] = fc_w.T (lane padded), row H = fc_b
    out_ref: (B, O_pad)
    """
    H = hidden_size
    T = seq_len

    y = y_ref[...]                                     # (T, B, 1) f32
    w = w_ref[...]                                     # (H+2, 4H) f32

    # Hoisted once: MXU operand for the recurrence (optionally bf16 — single-pass MXU
    # mode on v6e/v7x), and the input/bias rows (kept f32 on the VPU path).
    whh = w[:H, :].astype(matmul_dtype)                # (H, 4H)
    wih = w[H:H + 1, :]                                # (1, 4H)
    bias = w[H + 1:H + 2, :]                           # (1, 4H)

    # Input + bias pre-activations do not depend on h -> computed once, off the serial
    # h-chain, as one packed (T, B, 4H) array.  xwb[t] at static t is a free leading-axis
    # vreg select.
    xwb = y * wih + bias                               # (T, B, 4H) f32

    h = hc_ref[0]                                      # (B, H) f32
    c = hc_ref[1]                                      # (B, H) f32

    # seq_len is a small compile-time constant -> static unroll (see TODO above for large T).
    for t in range(T):
        # ONE fused lane-dense (B,H) @ (H,4H) matmul per step; f32 accumulation.
        gates = xwb[t] + jnp.dot(h.astype(matmul_dtype), whh,
                                 preferred_element_type=jnp.float32)      # (B, 4H) f32

        # Packed nonlinearities over all 128 lanes:
        #   sigmoid(x) = 0.5 * tanh(0.5 * x) + 0.5   (1 EUP push, no exp + divide)
        sg = 0.5 * jnp.tanh(0.5 * gates) + 0.5         # i | f | . | o  groups
        th = jnp.tanh(gates)                           # . | . | g | .  group

        # Static lane slices; Mosaic aligns the offset-32/64/96 groups with XLU lane
        # rotates (otherwise-idle slot) — equivalent to explicit pltpu.roll alignment.
        i_g = sg[:, 0 * H:1 * H]
        f_g = sg[:, 1 * H:2 * H]
        g_g = th[:, 2 * H:3 * H]
        o_g = sg[:, 3 * H:4 * H]

        c = f_g * c + i_g * g_g
        h = o_g * jnp.tanh(c)

    # fc(lstm_out.squeeze(0)) == fc(h after the last step); bias folded into the epilogue,
    # output lane-padded so the final store is unmasked / lane-dense.
    fc = fc_ref[...]                                   # (H+1, O_pad) f32
    out_ref[...] = (jnp.dot(h.astype(matmul_dtype), fc[:H, :].astype(matmul_dtype),
                            preferred_element_type=jnp.float32)
                    + fc[H:H + 1, :])


def decoder_forward(y_hist, params, h0, c0, *, hidden_size, seq_len, output_size,
                    matmul_dtype=jnp.float32):
    """params are PyTorch-layout:
    (w_ih (4H,1), w_hh (4H,H), b_ih (4H,), b_hh (4H,), fc_w (O,H), fc_b (O,)).

    matmul_dtype: dtype of the MXU operands (jnp.float32 or jnp.bfloat16); accumulation
    and the elementwise/EUP path are always f32.
    """
    w_ih, w_hh, b_ih, b_hh, fc_w, fc_b = params
    B, T = y_hist.shape
    H, O = hidden_size, output_size
    assert T == seq_len

    # ---- gate-fused packing (PyTorch gate order i,f,g,o along the lane axis) ----
    #   rows [0:H]  = w_hh.T  -> recurrence is a single h @ W (H, 4H) dot
    #   row  [H]    = w_ih.T  (input_size == 1)
    #   row  [H+1]  = b_ih + b_hh
    w_pack = jnp.concatenate(
        [w_hh.T, w_ih.T, (b_ih + b_hh)[None, :]], axis=0).astype(jnp.float32)   # (H+2, 4H)

    o_pad = ((O + 127) // 128) * 128                                 # lane-dense output
    fc_w_p = jnp.zeros((H, o_pad), jnp.float32).at[:, :O].set(fc_w.T)
    fc_b_p = jnp.zeros((1, o_pad), jnp.float32).at[0, :O].set(fc_b)
    fc_pack = jnp.concatenate([fc_w_p, fc_b_p], axis=0)              # (H+1, O_pad)

    hc0 = jnp.stack([h0, c0], axis=0)                                # (2, B, H)
    y_tb1 = jnp.transpose(y_hist)[:, :, None]                        # (T, B, 1)

    kernel = functools.partial(_decoder_kernel, seq_len=T, hidden_size=H,
                               matmul_dtype=matmul_dtype)
    vmem = pl.BlockSpec(memory_space=pltpu.MemorySpace.VMEM)
    # Gridless single program: all operands are a few KB, latency/overhead bound.
    out_pad = pl.pallas_call(
        kernel,
        out_shape=jax.ShapeDtypeStruct((B, o_pad), jnp.float32),
        in_specs=[vmem] * 4,
        out_specs=vmem,
    )(y_tb1, w_pack, hc0, fc_pack)
    return out_pad[:, :O]


def decoder_reference(y_hist, params, h0, c0, *, hidden_size, seq_len, output_size):
    """Pure-JAX reference mirroring the PyTorch Decoder.forward semantics (all f32)."""
    w_ih, w_hh, b_ih, b_hh, fc_w, fc_b = params
    H = hidden_size
    h, c = h0, c0
    b = b_ih + b_hh
    for t in range(seq_len):
        x_t = y_hist[:, t:t + 1]                                     # (B, 1)
        gates = x_t @ w_ih.T + h @ w_hh.T + b                        # (B, 4H)
        i_g = jax.nn.sigmoid(gates[:, 0 * H:1 * H])
        f_g = jax.nn.sigmoid(gates[:, 1 * H:2 * H])
        g_g = jnp.tanh(gates[:, 2 * H:3 * H])
        o_g = jax.nn.sigmoid(gates[:, 3 * H:4 * H])
        c = f_g * c + i_g * g_g
        h = o_g * jnp.tanh(c)
    return h @ fc_w.T + fc_b


def make_params(key, hidden_size, output_size):
    """Deterministic synthetic params (PyTorch-style uniform(-1/sqrt(H), 1/sqrt(H)))."""
    k = jax.random.split(key, 6)
    bound = 1.0 / math.sqrt(hidden_size)
    u = lambda kk, shape: jax.random.uniform(kk, shape, jnp.float32, -bound, bound)
    w_ih = u(k[0], (4 * hidden_size, 1))             # PyTorch weight_ih_l0
    w_hh = u(k[1], (4 * hidden_size, hidden_size))   # PyTorch weight_hh_l0
    b_ih = u(k[2], (4 * hidden_size,))
    b_hh = u(k[3], (4 * hidden_size,))
    fc_w = u(k[4], (output_size, hidden_size))       # PyTorch Linear weight
    fc_b = u(k[5], (output_size,))
    return (w_ih, w_hh, b_ih, b_hh, fc_w, fc_b)


def make_init_hidden(key, batch, hidden_size):
    """Mirror init_hidden(): xavier_normal_ on a (1, B, H) tensor, here deterministic."""
    fan_in = batch * hidden_size
    fan_out = 1 * hidden_size
    std = math.sqrt(2.0 / (fan_in + fan_out))
    k1, k2 = jax.random.split(key)
    h0 = std * jax.random.normal(k1, (batch, hidden_size), jnp.float32)
    c0 = std * jax.random.normal(k2, (batch, hidden_size), jnp.float32)
    return h0, c0


if __name__ == "__main__":
    B, T, H, O = 2, 8, 32, 4   # batch, seq_len, hidden_size, output_size

    key = jax.random.PRNGKey(0)
    k_y, k_p, k_h = jax.random.split(key, 3)

    y_hist = jax.random.normal(k_y, (B, T), jnp.float32)
    params = make_params(k_p, H, O)
    h0, c0 = make_init_hidden(k_h, B, H)

    ref = decoder_reference(y_hist, params, h0, c0,
                            hidden_size=H, seq_len=T, output_size=O)
    ref = jax.block_until_ready(ref)

    # (1) f32 MXU operands: tight tolerance so packing/gate-order regressions can't hide
    #     behind the previously loose 2e-2 bound.
    out_f32 = decoder_forward(y_hist, params, h0, c0,
                              hidden_size=H, seq_len=T, output_size=O,
                              matmul_dtype=jnp.float32)
    out_f32 = jax.block_until_ready(out_f32)
    assert out_f32.shape == (B, O)
    assert jnp.allclose(out_f32, ref, rtol=2e-3, atol=2e-3), "f32 kernel mismatch vs reference"

    # (2) bf16 MXU operands (recommended perf config on v6e/v7x; also fine on v5e — the
    #     elementwise/EUP path stays f32): looser tolerance because the T-step recurrence
    #     amplifies bf16 rounding.
    out_bf16 = decoder_forward(y_hist, params, h0, c0,
                               hidden_size=H, seq_len=T, output_size=O,
                               matmul_dtype=jnp.bfloat16)
    out_bf16 = jax.block_until_ready(out_bf16)
    assert out_bf16.shape == (B, O)
    assert jnp.allclose(out_bf16, ref, rtol=2e-2, atol=2e-2), "bf16 kernel mismatch vs reference"

    print("KERNEL_OK")
</pallas_src>

<mosaic_0001>
module attributes {stable_mosaic.version = 11 : i64} {
  func.func @_decoder_kernel(%arg0: memref<8x2x1xf32, #tpu.memory_space<vmem>>, %arg1: memref<34x128xf32, #tpu.memory_space<vmem>>, %arg2: memref<2x2x32xf32, #tpu.memory_space<vmem>>, %arg3: memref<33x128xf32, #tpu.memory_space<vmem>>, %arg4: memref<2x128xf32, #tpu.memory_space<vmem>>) attributes {dimension_semantics = [], scalar_prefetch = 0 : i64, scratch_operands = 0 : i64, tpu.core_type = #tpu.core_type<tc>} {
    %c0 = arith.constant 0 : index
    %c0_0 = arith.constant 0 : index
    %c0_1 = arith.constant 0 : index
    %0 = vector.load %arg0[%c0, %c0_0, %c0_1] : memref<8x2x1xf32, #tpu.memory_space<vmem>>, vector<8x2x1xf32>
    %c0_2 = arith.constant 0 : index
    %c0_3 = arith.constant 0 : index
    %1 = vector.load %arg1[%c0_2, %c0_3] : memref<34x128xf32, #tpu.memory_space<vmem>>, vector<34x128xf32>
    %2 = vector.extract_strided_slice %1 {offsets = [0, 0], sizes = [32, 128], strides = [1, 1]} : vector<34x128xf32> to vector<32x128xf32>
    %3 = vector.extract_strided_slice %1 {offsets = [32, 0], sizes = [1, 128], strides = [1, 1]} : vector<34x128xf32> to vector<1x128xf32>
    %4 = vector.extract_strided_slice %1 {offsets = [33, 0], sizes = [1, 128], strides = [1, 1]} : vector<34x128xf32> to vector<1x128xf32>
    %5 = vector.shape_cast %3 : vector<1x128xf32> to vector<1x1x128xf32>
    %6 = vector.broadcast %0 : vector<8x2x1xf32> to vector<8x2x128xf32>
    %7 = vector.broadcast %5 : vector<1x1x128xf32> to vector<8x2x128xf32>
    %8 = arith.mulf %6, %7 : vector<8x2x128xf32>
    %9 = vector.shape_cast %4 : vector<1x128xf32> to vector<1x1x128xf32>
    %10 = vector.broadcast %9 : vector<1x1x128xf32> to vector<8x2x128xf32>
    %11 = arith.addf %8, %10 : vector<8x2x128xf32>
    %c0_4 = arith.constant 0 : index
    %c0_5 = arith.constant 0 : index
    %c0_6 = arith.constant 0 : index
    %12 = vector.load %arg2[%c0_4, %c0_5, %c0_6] : memref<2x2x32xf32, #tpu.memory_space<vmem>>, vector<1x2x32xf32>
    %13 = vector.shape_cast %12 : vector<1x2x32xf32> to vector<2x32xf32>
    %c1 = arith.constant 1 : index
    %c0_7 = arith.constant 0 : index
    %c0_8 = arith.constant 0 : index
    %14 = vector.load %arg2[%c1, %c0_7, %c0_8] : memref<2x2x32xf32, #tpu.memory_space<vmem>>, vector<1x2x32xf32>
    %15 = vector.shape_cast %14 : vector<1x2x32xf32> to vector<2x32xf32>
    %16 = vector.extract_strided_slice %11 {offsets = [0, 0, 0], sizes = [1, 2, 128], strides = [1, 1, 1]} : vector<8x2x128xf32> to vector<1x2x128xf32>
    %17 = vector.shape_cast %16 : vector<1x2x128xf32> to vector<2x128xf32>
    %cst = arith.constant dense<0.000000e+00> : vector<2x128xf32>
    %18 = tpu.matmul %13, %2, %cst {dimension_numbers = #tpu.dot_dimension_numbers<[1], [0], [0], [1], [0, 0, 1, 1], [], []>} : vector<2x32xf32>, vector<32x128xf32>, vector<2x128xf32> -> vector<2x128xf32>
    %19 = arith.addf %17, %18 : vector<2x128xf32>
    %cst_9 = arith.constant 5.000000e-01 : f32
    %20 = vector.broadcast %cst_9 : f32 to vector<2x128xf32>
    %21 = arith.mulf %20, %19 : vector<2x128xf32>
    %22 = math.tanh %21 : vector<2x128xf32>
    %cst_10 = arith.constant 5.000000e-01 : f32
    %23 = vector.broadcast %cst_10 : f32 to vector<2x128xf32>
    %24 = arith.mulf %23, %22 : vector<2x128xf32>
    %cst_11 = arith.constant 5.000000e-01 : f32
    %25 = vector.broadcast %cst_11 : f32 to vector<2x128xf32>
    %26 = arith.addf %24, %25 : vector<2x128xf32>
    %27 = math.tanh %19 : vector<2x128xf32>
    %28 = vector.extract_strided_slice %26 {offsets = [0, 0], sizes = [2, 32], strides = [1, 1]} : vector<2x128xf32> to vector<2x32xf32>
    %29 = vector.extract_strided_slice %26 {offsets = [0, 32], sizes = [2, 32], strides = [1, 1]} : vector<2x128xf32> to vector<2x32xf32>
    %30 = vector.extract_strided_slice %27 {offsets = [0, 64], sizes = [2, 32], strides = [1, 1]} : vector<2x128xf32> to vector<2x32xf32>
    %31 = vector.extract_strided_slice %26 {offsets = [0, 96], sizes = [2, 32], strides = [1, 1]} : vector<2x128xf32> to vector<2x32xf32>
    %32 = arith.mulf %29, %15 : vector<2x32xf32>
    %33 = arith.mulf %28, %30 : vector<2x32xf32>
    %34 = arith.addf %32, %33 : vector<2x32xf32>
    %35 = math.tanh %34 : vector<2x32xf32>
    %36 = arith.mulf %31, %35 : vector<2x32xf32>
    %37 = vector.extract_strided_slice %11 {offsets = [1, 0, 0], sizes = [1, 2, 128], strides = [1, 1, 1]} : vector<8x2x128xf32> to vector<1x2x128xf32>
    %38 = vector.shape_cast %37 : vector<1x2x128xf32> to vector<2x128xf32>
    %cst_12 = arith.constant dense<0.000000e+00> : vector<2x128xf32>
    %39 = tpu.matmul %36, %2, %cst_12 {dimension_numbers = #tpu.dot_dimension_numbers<[1], [0], [0], [1], [0, 0, 1, 1], [], []>} : vector<2x32xf32>, vector<32x128xf32>, vector<2x128xf32> -> vector<2x128xf32>
    %40 = arith.addf %38, %39 : vector<2x128xf32>
    %cst_13 = arith.constant 5.000000e-01 : f32
    %41 = vector.broadcast %cst_13 : f32 to vector<2x128xf32>
    %42 = arith.mulf %41, %40 : vector<2x128xf32>
    %43 = math.tanh %42 : vector<2x128xf32>
    %cst_14 = arith.constant 5.000000e-01 : f32
    %44 = vector.broadcast %cst_14 : f32 to vector<2x128xf32>
    %45 = arith.mulf %44, %43 : vector<2x128xf32>
    %cst_15 = arith.constant 5.000000e-01 : f32
    %46 = vector.broadcast %cst_15 : f32 to vector<2x128xf32>
    %47 = arith.addf %45, %46 : vector<2x128xf32>
    %48 = math.tanh %40 : vector<2x128xf32>
    %49 = vector.extract_strided_slice %47 {offsets = [0, 0], sizes = [2, 32], strides = [1, 1]} : vector<2x128xf32> to vector<2x32xf32>
    %50 = vector.extract_strided_slice %47 {offsets = [0, 32], sizes = [2, 32], strides = [1, 1]} : vector<2x128xf32> to vector<2x32xf32>
    %51 = vector.extract_strided_slice %48 {offsets = [0, 64], sizes = [2, 32], strides = [1, 1]} : vector<2x128xf32> to vector<2x32xf32>
    %52 = vector.extract_strided_slice %47 {offsets = [0, 96], sizes = [2, 32], strides = [1, 1]} : vector<2x128xf32> to vector<2x32xf32>
    %53 = arith.mulf %50, %34 : vector<2x32xf32>
    %54 = arith.mulf %49, %51 : vector<2x32xf32>
    %55 = arith.addf %53, %54 : vector<2x32xf32>
    %56 = math.tanh %55 : vector<2x32xf32>
    %57 = arith.mulf %52, %56 : vector<2x32xf32>
    %58 = vector.extract_strided_slice %11 {offsets = [2, 0, 0], sizes = [1, 2, 128], strides = [1, 1, 1]} : vector<8x2x128xf32> to vector<1x2x128xf32>
    %59 = vector.shape_cast %58 : vector<1x2x128xf32> to vector<2x128xf32>
    %cst_16 = arith.constant dense<0.000000e+00> : vector<2x128xf32>
    %60 = tpu.matmul %57, %2, %cst_16 {dimension_numbers = #tpu.dot_dimension_numbers<[1], [0], [0], [1], [0, 0, 1, 1], [], []>} : vector<2x32xf32>, vector<32x128xf32>, vector<2x128xf32> -> vector<2x128xf32>
    %61 = arith.addf %59, %60 : vector<2x128xf32>
    %cst_17 = arith.constant 5.000000e-01 : f32
    %62 = vector.broadcast %cst_17 : f32 to vector<2x128xf32>
    %63 = arith.mulf %62, %61 : vector<2x128xf32>
    %64 = math.tanh %63 : vector<2x128xf32>
    %cst_18 = arith.constant 5.000000e-01 : f32
    %65 = vector.broadcast %cst_18 : f32 to vector<2x128xf32>
    %66 = arith.mulf %65, %64 : vector<2x128xf32>
    %cst_19 = arith.constant 5.000000e-01 : f32
    %67 = vector.broadcast %cst_19 : f32 to vector<2x128xf32>
    %68 = arith.addf %66, %67 : vector<2x128xf32>
    %69 = math.tanh %61 : vector<2x128xf32>
    %70 = vector.extract_strided_slice %68 {offsets = [0, 0], sizes = [2, 32], strides = [1, 1]} : vector<2x128xf32> to vector<2x32xf32>
    %71 = vector.extract_strided_slice %68 {offsets = [0, 32], sizes = [2, 32], strides = [1, 1]} : vector<2x128xf32> to vector<2x32xf32>
    %72 = vector.extract_strided_slice %69 {offsets = [0, 64], sizes = [2, 32], strides = [1, 1]} : vector<2x128xf32> to vector<2x32xf32>
    %73 = vector.extract_strided_slice %68 {offsets = [0, 96], sizes = [2, 32], strides = [1, 1]} : vector<2x128xf32> to vector<2x32xf32>
    %74 = arith.mulf %71, %55 : vector<2x32xf32>
    %75 = arith.mulf %70, %72 : vector<2x32xf32>
    %76 = arith.addf %74, %75 : vector<2x32xf32>
    %77 = math.tanh %76 : vector<2x32xf32>
    %78 = arith.mulf %73, %77 : vector<2x32xf32>
    %79 = vector.extract_strided_slice %11 {offsets = [3, 0, 0], sizes = [1, 2, 128], strides = [1, 1, 1]} : vector<8x2x128xf32> to vector<1x2x128xf32>
    %80 = vector.shape_cast %79 : vector<1x2x128xf32> to vector<2x128xf32>
    %cst_20 = arith.constant dense<0.000000e+00> : vector<2x128xf32>
    %81 = tpu.matmul %78, %2, %cst_20 {dimension_numbers = #tpu.dot_dimension_numbers<[1], [0], [0], [1], [0, 0, 1, 1], [], []>} : vector<2x32xf32>, vector<32x128xf32>, vector<2x128xf32> -> vector<2x128xf32>
    %82 = arith.addf %80, %81 : vector<2x128xf32>
    %cst_21 = arith.constant 5.000000e-01 : f32
    %83 = vector.broadcast %cst_21 : f32 to vector<2x128xf32>
    %84 = arith.mulf %83, %82 : vector<2x128xf32>
    %85 = math.tanh %84 : vector<2x128xf32>
    %cst_22 = arith.constant 5.000000e-01 : f32
    %86 = vector.broadcast %cst_22 : f32 to vector<2x128xf32>
    %87 = arith.mulf %86, %85 : vector<2x128xf32>
    %cst_23 = arith.constant 5.000000e-01 : f32
    %88 = vector.broadcast %cst_23 : f32 to vector<2x128xf32>
    %89 = arith.addf %87, %88 : vector<2x128xf32>
    %90 = math.tanh %82 : vector<2x128xf32>
    %91 = vector.extract_strided_slice %89 {offsets = [0, 0], sizes = [2, 32], strides = [1, 1]} : vector<2x128xf32> to vector<2x32xf32>
    %92 = vector.extract_strided_slice %89 {offsets = [0, 32], sizes = [2, 32], strides = [1, 1]} : vector<2x128xf32> to vector<2x32xf32>
    %93 = vector.extract_strided_slice %90 {offsets = [0, 64], sizes = [2, 32], strides = [1, 1]} : vector<2x128xf32> to vector<2x32xf32>
    %94 = vector.extract_strided_slice %89 {offsets = [0, 96], sizes = [2, 32], strides = [1, 1]} : vector<2x128xf32> to vector<2x32xf32>
    %95 = arith.mulf %92, %76 : vector<2x32xf32>
    %96 = arith.mulf %91, %93 : vector<2x32xf32>
    %97 = arith.addf %95, %96 : vector<2x32xf32>
    %98 = math.tanh %97 : vector<2x32xf32>
    %99 = arith.mulf %94, %98 : vector<2x32xf32>
    %100 = vector.extract_strided_slice %11 {offsets = [4, 0, 0], sizes = [1, 2, 128], strides = [1, 1, 1]} : vector<8x2x128xf32> to vector<1x2x128xf32>
    %101 = vector.shape_cast %100 : vector<1x2x128xf32> to vector<2x128xf32>
    %cst_24 = arith.constant dense<0.000000e+00> : vector<2x128xf32>
    %102 = tpu.matmul %99, %2, %cst_24 {dimension_numbers = #tpu.dot_dimension_numbers<[1], [0], [0], [1], [0, 0, 1, 1], [], []>} : vector<2x32xf32>, vector<32x128xf32>, vector<2x128xf32> -> vector<2x128xf32>
    %103 = arith.addf %101, %102 : vector<2x128xf32>
    %cst_25 = arith.constant 5.000000e-01 : f32
    %104 = vector.broadcast %cst_25 : f32 to vector<2x128xf32>
    %105 = arith.mulf %104, %103 : vector<2x128xf32>
    %106 = math.tanh %105 : vector<2x128xf32>
    %cst_26 = arith.constant 5.000000e-01 : f32
    %107 = vector.broadcast %cst_26 : f32 to vector<2x128xf32>
    %108 = arith.mulf %107, %106 : vector<2x128xf32>
    %cst_27 = arith.constant 5.000000e-01 : f32
    %109 = vector.broadcast %cst_27 : f32 to vector<2x128xf32>
    %110 = arith.addf %108, %109 : vector<2x128xf32>
    %111 = math.tanh %103 : vector<2x128xf32>
    %112 = vector.extract_strided_slice %110 {offsets = [0, 0], sizes = [2, 32], strides = [1, 1]} : vector<2x128xf32> to vector<2x32xf32>
    %113 = vector.extract_strided_slice %110 {offsets = [0, 32], sizes = [2, 32], strides = [1, 1]} : vector<2x128xf32> to vector<2x32xf32>
    %114 = vector.extract_strided_slice %111 {offsets = [0, 64], sizes = [2, 32], strides = [1, 1]} : vector<2x128xf32> to vector<2x32xf32>
    %115 = vector.extract_strided_slice %110 {offsets = [0, 96], sizes = [2, 32], strides = [1, 1]} : vector<2x128xf32> to vector<2x32xf32>
    %116 = arith.mulf %113, %97 : vector<2x32xf32>
    %117 = arith.mulf %112, %114 : vector<2x32xf32>
    %118 = arith.addf %116, %117 : vector<2x32xf32>
    %119 = math.tanh %118 : vector<2x32xf32>
    %120 = arith.mulf %115, %119 : vector<2x32xf32>
    %121 = vector.extract_strided_slice %11 {offsets = [5, 0, 0], sizes = [1, 2, 128], strides = [1, 1, 1]} : vector<8x2x128xf32> to vector<1x2x128xf32>
    %122 = vector.shape_cast %121 : vector<1x2x128xf32> to vector<2x128xf32>
    %cst_28 = arith.constant dense<0.000000e+00> : vector<2x128xf32>
    %123 = tpu.matmul %120, %2, %cst_28 {dimension_numbers = #tpu.dot_dimension_numbers<[1], [0], [0], [1], [0, 0, 1, 1], [], []>} : vector<2x32xf32>, vector<32x128xf32>, vector<2x128xf32> -> vector<2x128xf32>
    %124 = arith.addf %122, %123 : vector<2x128xf32>
    %cst_29 = arith.constant 5.000000e-01 : f32
    %125 = vector.broadcast %cst_29 : f32 to vector<2x128xf32>
    %126 = arith.mulf %125, %124 : vector<2x128xf32>
    %127 = math.tanh %126 : vector<2x128xf32>
    %cst_30 = arith.constant 5.000000e-01 : f32
    %128 = vector.broadcast %cst_30 : f32 to vector<2x128xf32>
    %129 = arith.mulf %128, %127 : vector<2x128xf32>
    %cst_31 = arith.constant 5.000000e-01 : f32
    %130 = vector.broadcast %cst_31 : f32 to vector<2x128xf32>
    %131 = arith.addf %129, %130 : vector<2x128xf32>
    %132 = math.tanh %124 : vector<2x128xf32>
    %133 = vector.extract_strided_slice %131 {offsets = [0, 0], sizes = [2, 32], strides = [1, 1]} : vector<2x128xf32> to vector<2x32xf32>
    %134 = vector.extract_strided_slice %131 {offsets = [0, 32], sizes = [2, 32], strides = [1, 1]} : vector<2x128xf32> to vector<2x32xf32>
    %135 = vector.extract_strided_slice %132 {offsets = [0, 64], sizes = [2, 32], strides = [1, 1]} : vector<2x128xf32> to vector<2x32xf32>
    %136 = vector.extract_strided_slice %131 {offsets = [0, 96], sizes = [2, 32], strides = [1, 1]} : vector<2x128xf32> to vector<2x32xf32>
    %137 = arith.mulf %134, %118 : vector<2x32xf32>
    %138 = arith.mulf %133, %135 : vector<2x32xf32>
    %139 = arith.addf %137, %138 : vector<2x32xf32>
    %140 = math.tanh %139 : vector<2x32xf32>
    %141 = arith.mulf %136, %140 : vector<2x32xf32>
    %142 = vector.extract_strided_slice %11 {offsets = [6, 0, 0], sizes = [1, 2, 128], strides = [1, 1, 1]} : vector<8x2x128xf32> to vector<1x2x128xf32>
    %143 = vector.shape_cast %142 : vector<1x2x128xf32> to vector<2x128xf32>
    %cst_32 = arith.constant dense<0.000000e+00> : vector<2x128xf32>
    %144 = tpu.matmul %141, %2, %cst_32 {dimension_numbers = #tpu.dot_dimension_numbers<[1], [0], [0], [1], [0, 0, 1, 1], [], []>} : vector<2x32xf32>, vector<32x128xf32>, vector<2x128xf32> -> vector<2x128xf32>
    %145 = arith.addf %143, %144 : vector<2x128xf32>
    %cst_33 = arith.constant 5.000000e-01 : f32
    %146 = vector.broadcast %cst_33 : f32 to vector<2x128xf32>
    %147 = arith.mulf %146, %145 : vector<2x128xf32>
    %148 = math.tanh %147 : vector<2x128xf32>
    %cst_34 = arith.constant 5.000000e-01 : f32
    %149 = vector.broadcast %cst_34 : f32 to vector<2x128xf32>
    %150 = arith.mulf %149, %148 : vector<2x128xf32>
    %cst_35 = arith.constant 5.000000e-01 : f32
    %151 = vector.broadcast %cst_35 : f32 to vector<2x128xf32>
    %152 = arith.addf %150, %151 : vector<2x128xf32>
    %153 = math.tanh %145 : vector<2x128xf32>
    %154 = vector.extract_strided_slice %152 {offsets = [0, 0], sizes = [2, 32], strides = [1, 1]} : vector<2x128xf32> to vector<2x32xf32>
    %155 = vector.extract_strided_slice %152 {offsets = [0, 32], sizes = [2, 32], strides = [1, 1]} : vector<2x128xf32> to vector<2x32xf32>
    %156 = vector.extract_strided_slice %153 {offsets = [0, 64], sizes = [2, 32], strides = [1, 1]} : vector<2x128xf32> to vector<2x32xf32>
    %157 = vector.extract_strided_slice %152 {offsets = [0, 96], sizes = [2, 32], strides = [1, 1]} : vector<2x128xf32> to vector<2x32xf32>
    %158 = arith.mulf %155, %139 : vector<2x32xf32>
    %159 = arith.mulf %154, %156 : vector<2x32xf32>
    %160 = arith.addf %158, %159 : vector<2x32xf32>
    %161 = math.tanh %160 : vector<2x32xf32>
    %162 = arith.mulf %157, %161 : vector<2x32xf32>
    %163 = vector.extract_strided_slice %11 {offsets = [7, 0, 0], sizes = [1, 2, 128], strides = [1, 1, 1]} : vector<8x2x128xf32> to vector<1x2x128xf32>
    %164 = vector.shape_cast %163 : vector<1x2x128xf32> to vector<2x128xf32>
    %cst_36 = arith.constant dense<0.000000e+00> : vector<2x128xf32>
    %165 = tpu.matmul %162, %2, %cst_36 {dimension_numbers = #tpu.dot_dimension_numbers<[1], [0], [0], [1], [0, 0, 1, 1], [], []>} : vector<2x32xf32>, vector<32x128xf32>, vector<2x128xf32> -> vector<2x128xf32>
    %166 = arith.addf %164, %165 : vector<2x128xf32>
    %cst_37 = arith.constant 5.000000e-01 : f32
    %167 = vector.broadcast %cst_37 : f32 to vector<2x128xf32>
    %168 = arith.mulf %167, %166 : vector<2x128xf32>
    %169 = math.tanh %168 : vector<2x128xf32>
    %cst_38 = arith.constant 5.000000e-01 : f32
    %170 = vector.broadcast %cst_38 : f32 to vector<2x128xf32>
    %171 = arith.mulf %170, %169 : vector<2x128xf32>
    %cst_39 = arith.constant 5.000000e-01 : f32
    %172 = vector.broadcast %cst_39 : f32 to vector<2x128xf32>
    %173 = arith.addf %171, %172 : vector<2x128xf32>
    %174 = math.tanh %166 : vector<2x128xf32>
    %175 = vector.extract_strided_slice %173 {offsets = [0, 0], sizes = [2, 32], strides = [1, 1]} : vector<2x128xf32> to vector<2x32xf32>
    %176 = vector.extract_strided_slice %173 {offsets = [0, 32], sizes = [2, 32], strides = [1, 1]} : vector<2x128xf32> to vector<2x32xf32>
    %177 = vector.extract_strided_slice %174 {offsets = [0, 64], sizes = [2, 32], strides = [1, 1]} : vector<2x128xf32> to vector<2x32xf32>
    %178 = vector.extract_strided_slice %173 {offsets = [0, 96], sizes = [2, 32], strides = [1, 1]} : vector<2x128xf32> to vector<2x32xf32>
    %179 = arith.mulf %176, %160 : vector<2x32xf32>
    %180 = arith.mulf %175, %177 : vector<2x32xf32>
    %181 = arith.addf %179, %180 : vector<2x32xf32>
    %182 = math.tanh %181 : vector<2x32xf32>
    %183 = arith.mulf %178, %182 : vector<2x32xf32>
    %c0_40 = arith.constant 0 : index
    %c0_41 = arith.constant 0 : index
    %184 = vector.load %arg3[%c0_40, %c0_41] : memref<33x128xf32, #tpu.memory_space<vmem>>, vector<33x128xf32>
    %185 = vector.extract_strided_slice %184 {offsets = [0, 0], sizes = [32, 128], strides = [1, 1]} : vector<33x128xf32> to vector<32x128xf32>
    %cst_42 = arith.constant dense<0.000000e+00> : vector<2x128xf32>
    %186 = tpu.matmul %183, %185, %cst_42 {dimension_numbers = #tpu.dot_dimension_numbers<[1], [0], [0], [1], [0, 0, 1, 1], [], []>} : vector<2x32xf32>, vector<32x128xf32>, vector<2x128xf32> -> vector<2x128xf32>
    %187 = vector.extract_strided_slice %184 {offsets = [32, 0], sizes = [1, 128], strides = [1, 1]} : vector<33x128xf32> to vector<1x128xf32>
    %188 = vector.broadcast %187 : vector<1x128xf32> to vector<2x128xf32>
    %189 = arith.addf %186, %188 : vector<2x128xf32>
    %c0_43 = arith.constant 0 : index
    %c0_44 = arith.constant 0 : index
    %190 = vector.load %arg4[%c0_43, %c0_44] : memref<2x128xf32, #tpu.memory_space<vmem>>, vector<2x128xf32>
    tpu.vector_store %arg4[%c0_43, %c0_44], %189 {strides = array<i32>} : memref<2x128xf32, #tpu.memory_space<vmem>>, vector<2x128xf32>,
    return
  }
}

</mosaic_0001>

<llo_original>
// kernel: tpu_custom_call.1
$region0: #{tpu_custom_call.1}
  #allocation0 [shape = 'u32[]', space=smem, size = 0x4, offset = 0x4, fixed_abs, tag = 'smem constant byte address 0x4 - core index']
  #allocation1 [shape = 'u32[144,128]{1,0:T(1,128)}', space=vmem, size = 0x12000, scoped, tag = 'internal scratch']
  %s0 = inlined_call_operand.vmem [shape: f32[8,2,1], index: 0, kind: input, shape index: {}]
  %s1 = inlined_call_operand.hbm [shape: f32[34,128], index: 1, kind: input, shape index: {}]
  %s2 = inlined_call_operand.vmem [shape: f32[2,2,32], index: 2, kind: input, shape index: {}]
  %s3 = inlined_call_operand.hbm [shape: f32[33,128], index: 3, kind: input, shape index: {}]
  %s4 = inlined_call_operand.hbm [shape: f32[2,128], index: 4, kind: output, shape index: {}]
  %s5 = sld [smem:[#allocation0]]
  $region34: #{tpu_custom_call.1} parent=0
    _
  %s7 = ssub.s32 1, %s5
  %s8 = scalar_select 0, %s7, %s5
  $region1: #{tpu_custom_call.1} parent=0
    #allocation2 [shape = 'u8[20480]{0}', space=vmem, size = 0x5000, scoped, tag = 'input window, operand 1, single buffered']
    #allocation3 [shape = 's32[1]{0}', space=sflag, size = 0x4, scoped, tag = 'scoped memory for tpu_custom_call.1']
    #allocation4 [shape = 's32[1]{0}', space=sflag, size = 0x4, scoped, tag = 'scoped memory for tpu_custom_call.1']
    #allocation5 [shape = 'u8[20480]{0}', space=vmem, size = 0x5000, scoped, tag = 'input window, operand 3, single buffered']
    #allocation6 [shape = 's32[1]{0}', space=sflag, size = 0x4, scoped, tag = 'scoped memory for tpu_custom_call.1']
    #allocation7 [shape = 'u8[1024]{0}', space=vmem, size = 0x400, scoped, tag = 'output window, operand 0, single buffered']
    %9 = vsyncpa [#allocation3], 0
    %10 = vsyncpa [#allocation6], 0
    %11 = vsyncpa [#allocation4], 0
    // Predicated region
    $region2: #{tpu_custom_call.1} parent=1 // pred_check
      _
    $region3: #{tpu_custom_call.1} parent=1 // pred_check_branch
      %13 = sbr.rel (0) target = $region5
    $region4: #{tpu_custom_call.1} parent=1 // pred_region
      _
    $region5: #{tpu_custom_call.1} parent=1 // pred_fallthru
      _
    // Predicated region
    $region6: #{tpu_custom_call.1} parent=1 // pred_check
      _
    $region7: #{tpu_custom_call.1} parent=1 // pred_check_branch
      %15 = sbr.rel (0) target = $region9
    $region8: #{tpu_custom_call.1} parent=1 // pred_region
      %s17 = ssub.s32 640, 640
      %18 = vsyncadd [#allocation3], %s17
      %s19 = sshll.u32 [#allocation2], 4
      %s20 = int_to_ptr.vmem [resolvable:$true] %s19
      %25 = dma.hbm_to_vmem [thread:$0]  %s1, 640, %s20, [#allocation3], 128, 128, 8
    $region9: #{tpu_custom_call.1} parent=1 // pred_fallthru
      _
    // Predicated region
    $region10: #{tpu_custom_call.1} parent=1 // pred_check
      _
    $region11: #{tpu_custom_call.1} parent=1 // pred_check_branch
      %27 = sbr.rel (0) target = $region13
    $region12: #{tpu_custom_call.1} parent=1 // pred_region
      _
    $region13: #{tpu_custom_call.1} parent=1 // pred_fallthru
      _
    // Predicated region
    $region14: #{tpu_custom_call.1} parent=1 // pred_check
      _
    $region15: #{tpu_custom_call.1} parent=1 // pred_check_branch
      %29 = sbr.rel (0) target = $region17
    $region16: #{tpu_custom_call.1} parent=1 // pred_region
      %s31 = ssub.s32 640, 640
      %32 = vsyncadd [#allocation6], %s31
      %s33 = sshll.u32 [#allocation5], 4
      %s34 = int_to_ptr.vmem [resolvable:$true] %s33
      %39 = dma.hbm_to_vmem [thread:$0]  %s3, 640, %s34, [#allocation6], 128, 128, 8
    $region17: #{tpu_custom_call.1} parent=1 // pred_fallthru
      _
    // Predicated region
    $region18: #{tpu_custom_call.1} parent=1 // pred_check
      _
    $region19: #{tpu_custom_call.1} parent=1 // pred_check_branch
      %41 = sbr.rel (0) target = $region21
    $region20: #{tpu_custom_call.1} parent=1 // pred_region
      %42 = dma.done [#allocation3], 640
    $region21: #{tpu_custom_call.1} parent=1 // pred_fallthru
      _
    // Predicated region
    $region22: #{tpu_custom_call.1} parent=1 // pred_check
      _
    $region23: #{tpu_custom_call.1} parent=1 // pred_check_branch
      %44 = sbr.rel (0) target = $region25
    $region24: #{tpu_custom_call.1} parent=1 // pred_region
      %45 = dma.done [#allocation6], 640
    $region25: #{tpu_custom_call.1} parent=1 // pred_fallthru
      _
    %v46 = vld [vmem:[%s0] sm:$0x3]
    %v47 = vld [vmem:[%s0 + $0x2] sm:$0x3]
    %v48 = vld [vmem:[%s0 + $0x4] sm:$0x3]
    %v49 = vld [vmem:[%s0 + $0x6] sm:$0x3]
    %v50 = vld [vmem:[%s0 + $0x8] sm:$0x3]
    %v51 = vld [vmem:[%s0 + $0xa] sm:$0x3]
    %v52 = vld [vmem:[%s0 + $0xc] sm:$0x3]
    %v53 = vld [vmem:[%s0 + $0xe] sm:$0x3]
    %v54 = vld [vmem:[#allocation2] sm:$0xff]
    %v55 = vld [vmem:[#allocation2 + $0x8] sm:$0xff]
    %v56 = vld [vmem:[#allocation2 + $0x10] sm:$0xff]
    %v57 = vld [vmem:[#allocation2 + $0x18] sm:$0xff]
    %v58 = vld [vmem:[#allocation2 + $0x20] sm:$0x3]
    %60 = vset.pattern.permute.xlu0 0
    %61 = vperm.xlu0 %60, %v46
    %v62 = vpop.permute.xlu0 %61
    %65 = vset.pattern.permute.xlu0 0
    %66 = vperm.xlu0 %65, %v47
    %v67 = vpop.permute.xlu0 %66
    %70 = vset.pattern.permute.xlu0 0
    %71 = vperm.xlu0 %70, %v48
    %v72 = vpop.permute.xlu0 %71
    %75 = vset.pattern.permute.xlu0 0
    %76 = vperm.xlu0 %75, %v49
    %v77 = vpop.permute.xlu0 %76
    %80 = vset.pattern.permute.xlu0 0
    %81 = vperm.xlu0 %80, %v50
    %v82 = vpop.permute.xlu0 %81
    %85 = vset.pattern.permute.xlu0 0
    %86 = vperm.xlu0 %85, %v51
    %v87 = vpop.permute.xlu0 %86
    %90 = vset.pattern.permute.xlu0 0
    %91 = vperm.xlu0 %90, %v52
    %v92 = vpop.permute.xlu0 %91
    %95 = vset.pattern.permute.xlu0 0
    %96 = vperm.xlu0 %95, %v53
    %v97 = vpop.permute.xlu0 %96
    %v99 = vlaneseq
    %v100 = vshrl.u32 %v99, 7
    %v101 = vsub.s32 0, %v100
    %v102 = vrot.slane %v58, %v101
    %v103 = vmul.f32 %v62, %v102
    %v104 = vmul.f32 %v67, %v102
    %v105 = vmul.f32 %v72, %v102
    %v106 = vmul.f32 %v77, %v102
    %v107 = vmul.f32 %v82, %v102
    %v108 = vmul.f32 %v87, %v102
    %v109 = vmul.f32 %v92, %v102
    %v110 = vmul.f32 %v97, %v102
    %v111 = vlaneseq
    %v112 = vshrl.u32 %v111, 7
    %v113 = vsub.s32 1, %v112
    %v114 = vrot.slane %v58, %v113
    %v115 = vadd.f32 %v103, %v114
    %v116 = vadd.f32 %v104, %v114
    %v117 = vadd.f32 %v105, %v114
    %v118 = vadd.f32 %v106, %v114
    %v119 = vadd.f32 %v107, %v114
    %v120 = vadd.f32 %v108, %v114
    %v121 = vadd.f32 %v109, %v114
    %v122 = vadd.f32 %v110, %v114
    %v123 = vld [vmem:[%s2] sm:$0x3]
    %s124 = scalar_lea.vmem %s2, 2
    %v125 = vld [vmem:[%s124] sm:$0x3]
    %vm126 = vcmask 261120
    %v128 = vsel %vm126, %v123, 0
    %130 = vmatprep.subr.mxu0 0.0
    %131 = vmatpush1.msra.mxu0 %v54
    %132 = vmatprep.subr.mxu0 0.0
    %133 = vmatpush1.msra.mxu0 %v55
    %134 = vmatprep.subr.mxu0 0.0
    %135 = vmatpush1.msra.mxu0 %v56
    %136 = vmatprep.subr.mxu0 0.0
    %137 = vmatpush1.msra.mxu0 %v57
    %138 = vmatprep.subr.mxu0 0.0
    %139 = vmatpush1.msra.mxu0 0.0
    %140 = vmatprep.subr.mxu0 0.0
    %141 = vmatpush1.msra.mxu0 0.0
    %142 = vmatprep.subr.mxu0 0.0
    %143 = vmatpush1.msra.mxu0 0.0
    %144 = vmatprep.subr.mxu0 0.0
    %145 = vmatpush1.msra.mxu0 0.0
    %146 = vmatprep.subr.mxu0 0.0
    %147 = vmatpush1.msra.mxu0 0.0
    %148 = vmatprep.subr.mxu0 0.0
    %149 = vmatpush1.msra.mxu0 0.0
    %150 = vmatprep.subr.mxu0 0.0
    %151 = vmatpush1.msra.mxu0 0.0
    %152 = vmatprep.subr.mxu0 0.0
    %153 = vmatpush1.msra.mxu0 0.0
    %154 = vmatprep.subr.mxu0 0.0
    %155 = vmatpush1.msra.mxu0 0.0
    %156 = vmatprep.subr.mxu0 0.0
    %157 = vmatpush1.msra.mxu0 0.0
    %158 = vmatprep.subr.mxu0 0.0
    %159 = vmatpush1.msra.mxu0 0.0
    %160 = vmatprep.subr.mxu0 0.0
    %161 = vmatpush1.msra.mxu0 0.0
    %162 = vmatprep.subr.mxu0 0.0
    %163 = vmatpush1.msra.mxu0 0.0
    %164 = vmatprep.subr.mxu0 0.0
    %165 = vmatpush1.msra.mxu0 0.0
    %166 = vmatprep.subr.mxu0 0.0
    %167 = vmatpush1.msra.mxu0 0.0
    %168 = vmatprep.subr.mxu0 0.0
    %169 = vmatpush1.msra.mxu0 0.0
    %170 = vmatprep.subr.mxu0 0.0
    %171 = vmatpush1.msra.mxu0 0.0
    %172 = vmatprep.subr.mxu0 0.0
    %173 = vmatpush1.msra.mxu0 0.0
    %174 = vmatprep.subr.mxu0 0.0
    %175 = vmatpush1.msra.mxu0 0.0
    %176 = vmatprep.subr.mxu0 0.0
    %177 = vmatpush1.msra.mxu0 0.0
    %178 = vmatprep.subr.mxu0 0.0
    %179 = vmatpush1.msra.mxu0 0.0
    %180 = vmatprep.subr.mxu0 0.0
    %181 = vmatpush1.msra.mxu0 0.0
    %182 = vmatprep.subr.mxu0 0.0
    %183 = vmatpush1.msra.mxu0 0.0
    %184 = vmatprep.subr.mxu0 0.0
    %185 = vmatpush1.msra.mxu0 0.0
    %186 = vmatprep.subr.mxu0 0.0
    %187 = vmatpush1.msra.mxu0 0.0
    %188 = vmatprep.subr.mxu0 0.0
    %189 = vmatpush1.msra.mxu0 0.0
    %190 = vmatprep.subr.mxu0 0.0
    %191 = vmatpush1.msra.mxu0 0.0
    %192 = vmatprep.subr.mxu0 0.0
    %193 = vmatpush1.msra.mxu0 0.0
    %194 = vmatprep.mubr.f32.mxu0 0.0
    %195 = vmatmul.mubr.f32.gmra.mrb[0].mxu0 %v128
    %v196 = vpop.f32.mrb[0].mxu0
    %v197 = vadd.f32 0.0, %v196
    %v198 = vpop.f32.mrb[0].mxu0
    %199 = vdwg.mxu0
    %v200 = vadd.f32 %v115, %v197
    %v201 = vmul.f32 %v200, 0.5
    %v202 = vtanh.pop %v201
    %v203 = vmul.f32 %v202, 0.5
    %v204 = vadd.f32 %v203, 0.5
    %v205 = vtanh.pop %v200
    %207 = vrot.lane.b32.xlu0 %v125, 32
    %v208 = vpop.permute.xlu0 %207
    %v210 = vmul.f32 %v204, %v208
    %212 = vrot.lane.b32.xlu0 %v205, 64
    %v213 = vpop.permute.xlu0 %212
    %v215 = vmul.f32 %v204, %v213
    %217 = vrot.lane.b32.xlu0 %v215, 32
    %v218 = vpop.permute.xlu0 %217
    %v220 = vadd.f32 %v210, %v218
    %v221 = vtanh.pop %v220
    %223 = vrot.lane.b32.xlu0 %v221, 64
    %v224 = vpop.permute.xlu0 %223
    %v226 = vmul.f32 %v204, %v224
    %228 = vrot.lane.b32.xlu0 %v226, 32
    %v229 = vpop.permute.xlu0 %228
    %v230 = vsel %vm126, %v229, 0
    %232 = vmatprep.subr.mxu0 0.0
    %233 = vmatpush1.msra.mxu0 %v54
    %234 = vmatprep.subr.mxu0 0.0
    %235 = vmatpush1.msra.mxu0 %v55
    %236 = vmatprep.subr.mxu0 0.0
    %237 = vmatpush1.msra.mxu0 %v56
    %238 = vmatprep.subr.mxu0 0.0
    %239 = vmatpush1.msra.mxu0 %v57
    %240 = vmatprep.subr.mxu0 0.0
    %241 = vmatpush1.msra.mxu0 0.0
    %242 = vmatprep.subr.mxu0 0.0
    %243 = vmatpush1.msra.mxu0 0.0
    %244 = vmatprep.subr.mxu0 0.0
    %245 = vmatpush1.msra.mxu0 0.0
    %246 = vmatprep.subr.mxu0 0.0
    %247 = vmatpush1.msra.mxu0 0.0
    %248 = vmatprep.subr.mxu0 0.0
    %249 = vmatpush1.msra.mxu0 0.0
    %250 = vmatprep.subr.mxu0 0.0
    %251 = vmatpush1.msra.mxu0 0.0
    %252 = vmatprep.subr.mxu0 0.0
    %253 = vmatpush1.msra.mxu0 0.0
    %254 = vmatprep.subr.mxu0 0.0
    %255 = vmatpush1.msra.mxu0 0.0
    %256 = vmatprep.subr.mxu0 0.0
    %257 = vmatpush1.msra.mxu0 0.0
    %258 = vmatprep.subr.mxu0 0.0
    %259 = vmatpush1.msra.mxu0 0.0
    %260 = vmatprep.subr.mxu0 0.0
    %261 = vmatpush1.msra.mxu0 0.0
    %262 = vmatprep.subr.mxu0 0.0
    %263 = vmatpush1.msra.mxu0 0.0
    %264 = vmatprep.subr.mxu0 0.0
    %265 = vmatpush1.msra.mxu0 0.0
    %266 = vmatprep.subr.mxu0 0.0
    %267 = vmatpush1.msra.mxu0 0.0
    %268 = vmatprep.subr.mxu0 0.0
    %269 = vmatpush1.msra.mxu0 0.0
    %270 = vmatprep.subr.mxu0 0.0
    %271 = vmatpush1.msra.mxu0 0.0
    %272 = vmatprep.subr.mxu0 0.0
    %273 = vmatpush1.msra.mxu0 0.0
    %274 = vmatprep.subr.mxu0 0.0
    %275 = vmatpush1.msra.mxu0 0.0
    %276 = vmatprep.subr.mxu0 0.0
    %277 = vmatpush1.msra.mxu0 0.0
    %278 = vmatprep.subr.mxu0 0.0
    %279 = vmatpush1.msra.mxu0 0.0
    %280 = vmatprep.subr.mxu0 0.0
    %281 = vmatpush1.msra.mxu0 0.0
    %282 = vmatprep.subr.mxu0 0.0
    %283 = vmatpush1.msra.mxu0 0.0
    %284 = vmatprep.subr.mxu0 0.0
    %285 = vmatpush1.msra.mxu0 0.0
    %286 = vmatprep.subr.mxu0 0.0
    %287 = vmatpush1.msra.mxu0 0.0
    %288 = vmatprep.subr.mxu0 0.0
    %289 = vmatpush1.msra.mxu0 0.0
    %290 = vmatprep.subr.mxu0 0.0
    %291 = vmatpush1.msra.mxu0 0.0
    %292 = vmatprep.subr.mxu0 0.0
    %293 = vmatpush1.msra.mxu0 0.0
    %294 = vmatprep.subr.mxu0 0.0
    %295 = vmatpush1.msra.mxu0 0.0
    %296 = vmatprep.mubr.f32.mxu0 0.0
    %297 = vmatmul.mubr.f32.gmra.mrb[0].mxu0 %v230
    %v298 = vpop.f32.mrb[0].mxu0
    %v299 = vadd.f32 0.0, %v298
    %v300 = vpop.f32.mrb[0].mxu0
    %301 = vdwg.mxu0
    %v302 = vadd.f32 %v116, %v299
    %v303 = vmul.f32 %v302, 0.5
    %v304 = vtanh.pop %v303
    %v305 = vmul.f32 %v304, 0.5
    %v306 = vadd.f32 %v305, 0.5
    %v307 = vtanh.pop %v302
    %v308 = vmul.f32 %v306, %v220
    %310 = vrot.lane.b32.xlu0 %v307, 64
    %v311 = vpop.permute.xlu0 %310
    %v313 = vmul.f32 %v306, %v311
    %315 = vrot.lane.b32.xlu0 %v313, 32
    %v316 = vpop.permute.xlu0 %315
    %v318 = vadd.f32 %v308, %v316
    %v319 = vtanh.pop %v318
    %321 = vrot.lane.b32.xlu0 %v319, 64
    %v322 = vpop.permute.xlu0 %321
    %v324 = vmul.f32 %v306, %v322
    %326 = vrot.lane.b32.xlu0 %v324, 32
    %v327 = vpop.permute.xlu0 %326
    %v328 = vsel %vm126, %v327, 0
    %330 = vmatprep.subr.mxu0 0.0
    %331 = vmatpush1.msra.mxu0 %v54
    %332 = vmatprep.subr.mxu0 0.0
    %333 = vmatpush1.msra.mxu0 %v55
    %334 = vmatprep.subr.mxu0 0.0
    %335 = vmatpush1.msra.mxu0 %v56
    %336 = vmatprep.subr.mxu0 0.0
    %337 = vmatpush1.msra.mxu0 %v57
    %338 = vmatprep.subr.mxu0 0.0
    %339 = vmatpush1.msra.mxu0 0.0
    %340 = vmatprep.subr.mxu0 0.0
    %341 = vmatpush1.msra.mxu0 0.0
    %342 = vmatprep.subr.mxu0 0.0
    %343 = vmatpush1.msra.mxu0 0.0
    %344 = vmatprep.subr.mxu0 0.0
    %345 = vmatpush1.msra.mxu0 0.0
    %346 = vmatprep.subr.mxu0 0.0
    %347 = vmatpush1.msra.mxu0 0.0
    %348 = vmatprep.subr.mxu0 0.0
    %349 = vmatpush1.msra.mxu0 0.0
    %350 = vmatprep.subr.mxu0 0.0
    %351 = vmatpush1.msra.mxu0 0.0
    %352 = vmatprep.subr.mxu0 0.0
    %353 = vmatpush1.msra.mxu0 0.0
    %354 = vmatprep.subr.mxu0 0.0
    %355 = vmatpush1.msra.mxu0 0.0
    %356 = vmatprep.subr.mxu0 0.0
    %357 = vmatpush1.msra.mxu0 0.0
    %358 = vmatprep.subr.mxu0 0.0
    %359 = vmatpush1.msra.mxu0 0.0
    %360 = vmatprep.subr.mxu0 0.0
    %361 = vmatpush1.msra.mxu0 0.0
    %362 = vmatprep.subr.mxu0 0.0
    %363 = vmatpush1.msra.mxu0 0.0
    %364 = vmatprep.subr.mxu0 0.0
    %365 = vmatpush1.msra.mxu0 0.0
    %366 = vmatprep.subr.mxu0 0.0
    %367 = vmatpush1.msra.mxu0 0.0
    %368 = vmatprep.subr.mxu0 0.0
    %369 = vmatpush1.msra.mxu0 0.0
    %370 = vmatprep.subr.mxu0 0.0
    %371 = vmatpush1.msra.mxu0 0.0
    %372 = vmatprep.subr.mxu0 0.0
    %373 = vmatpush1.msra.mxu0 0.0
    %374 = vmatprep.subr.mxu0 0.0
    %375 = vmatpush1.msra.mxu0 0.0
    %376 = vmatprep.subr.mxu0 0.0
    %377 = vmatpush1.msra.mxu0 0.0
    %378 = vmatprep.subr.mxu0 0.0
    %379 = vmatpush1.msra.mxu0 0.0
    %380 = vmatprep.subr.mxu0 0.0
    %381 = vmatpush1.msra.mxu0 0.0
    %382 = vmatprep.subr.mxu0 0.0
    %383 = vmatpush1.msra.mxu0 0.0
    %384 = vmatprep.subr.mxu0 0.0
    %385 = vmatpush1.msra.mxu0 0.0
    %386 = vmatprep.subr.mxu0 0.0
    %387 = vmatpush1.msra.mxu0 0.0
    %388 = vmatprep.subr.mxu0 0.0
    %389 = vmatpush1.msra.mxu0 0.0
    %390 = vmatprep.subr.mxu0 0.0
    %391 = vmatpush1.msra.mxu0 0.0
    %392 = vmatprep.subr.mxu0 0.0
    %393 = vmatpush1.msra.mxu0 0.0
    %394 = vmatprep.mubr.f32.mxu0 0.0
    %395 = vmatmul.mubr.f32.gmra.mrb[0].mxu0 %v328
    %v396 = vpop.f32.mrb[0].mxu0
    %v397 = vadd.f32 0.0, %v396
    %v398 = vpop.f32.mrb[0].mxu0
    %399 = vdwg.mxu0
    %v400 = vadd.f32 %v117, %v397
    %v401 = vmul.f32 %v400, 0.5
    %v402 = vtanh.pop %v401
    %v403 = vmul.f32 %v402, 0.5
    %v404 = vadd.f32 %v403, 0.5
    %v405 = vtanh.pop %v400
    %v406 = vmul.f32 %v404, %v318
    %408 = vrot.lane.b32.xlu0 %v405, 64
    %v409 = vpop.permute.xlu0 %408
    %v411 = vmul.f32 %v404, %v409
    %413 = vrot.lane.b32.xlu0 %v411, 32
    %v414 = vpop.permute.xlu0 %413
    %v416 = vadd.f32 %v406, %v414
    %v417 = vtanh.pop %v416
    %419 = vrot.lane.b32.xlu0 %v417, 64
    %v420 = vpop.permute.xlu0 %419
    %v422 = vmul.f32 %v404, %v420
    %424 = vrot.lane.b32.xlu0 %v422, 32
    %v425 = vpop.permute.xlu0 %424
    %v426 = vsel %vm126, %v425, 0
    %428 = vmatprep.subr.mxu0 0.0
    %429 = vmatpush1.msra.mxu0 %v54
    %430 = vmatprep.subr.mxu0 0.0
    %431 = vmatpush1.msra.mxu0 %v55
    %432 = vmatprep.subr.mxu0 0.0
    %433 = vmatpush1.msra.mxu0 %v56
    %434 = vmatprep.subr.mxu0 0.0
    %435 = vmatpush1.msra.mxu0 %v57
    %436 = vmatprep.subr.mxu0 0.0
    %437 = vmatpush1.msra.mxu0 0.0
    %438 = vmatprep.subr.mxu0 0.0
    %439 = vmatpush1.msra.mxu0 0.0
    %440 = vmatprep.subr.mxu0 0.0
    %441 = vmatpush1.msra.mxu0 0.0
    %442 = vmatprep.subr.mxu0 0.0
    %443 = vmatpush1.msra.mxu0 0.0
    %444 = vmatprep.subr.mxu0 0.0
    %445 = vmatpush1.msra.mxu0 0.0
    %446 = vmatprep.subr.mxu0 0.0
    %447 = vmatpush1.msra.mxu0 0.0
    %448 = vmatprep.subr.mxu0 0.0
    %449 = vmatpush1.msra.mxu0 0.0
    %450 = vmatprep.subr.mxu0 0.0
    %451 = vmatpush1.msra.mxu0 0.0
    %452 = vmatprep.subr.mxu0 0.0
    %453 = vmatpush1.msra.mxu0 0.0
    %454 = vmatprep.subr.mxu0 0.0
    %455 = vmatpush1.msra.mxu0 0.0
    %456 = vmatprep.subr.mxu0 0.0
    %457 = vmatpush1.msra.mxu0 0.0
    %458 = vmatprep.subr.mxu0 0.0
    %459 = vmatpush1.msra.mxu0 0.0
    %460 = vmatprep.subr.mxu0 0.0
    %461 = vmatpush1.msra.mxu0 0.0
    %462 = vmatprep.subr.mxu0 0.0
    %463 = vmatpush1.msra.mxu0 0.0
    %464 = vmatprep.subr.mxu0 0.0
    %465 = vmatpush1.msra.mxu0 0.0
    %466 = vmatprep.subr.mxu0 0.0
    %467 = vmatpush1.msra.mxu0 0.0
    %468 = vmatprep.subr.mxu0 0.0
    %469 = vmatpush1.msra.mxu0 0.0
    %470 = vmatprep.subr.mxu0 0.0
    %471 = vmatpush1.msra.mxu0 0.0
    %472 = vmatprep.subr.mxu0 0.0
    %473 = vmatpush1.msra.mxu0 0.0
    %474 = vmatprep.subr.mxu0 0.0
    %475 = vmatpush1.msra.mxu0 0.0
    %476 = vmatprep.subr.mxu0 0.0
    %477 = vmatpush1.msra.mxu0 0.0
    %478 = vmatprep.subr.mxu0 0.0
    %479 = vmatpush1.msra.mxu0 0.0
    %480 = vmatprep.subr.mxu0 0.0
    %481 = vmatpush1.msra.mxu0 0.0
    %482 = vmatprep.subr.mxu0 0.0
    %483 = vmatpush1.msra.mxu0 0.0
    %484 = vmatprep.subr.mxu0 0.0
    %485 = vmatpush1.msra.mxu0 0.0
    %486 = vmatprep.subr.mxu0 0.0
    %487 = vmatpush1.msra.mxu0 0.0
    %488 = vmatprep.subr.mxu0 0.0
    %489 = vmatpush1.msra.mxu0 0.0
    %490 = vmatprep.subr.mxu0 0.0
    %491 = vmatpush1.msra.mxu0 0.0
    %492 = vmatprep.mubr.f32.mxu0 0.0
    %493 = vmatmul.mubr.f32.gmra.mrb[0].mxu0 %v426
    %v494 = vpop.f32.mrb[0].mxu0
    %v495 = vadd.f32 0.0, %v494
    %v496 = vpop.f32.mrb[0].mxu0
    %497 = vdwg.mxu0
    %v498 = vadd.f32 %v118, %v495
    %v499 = vmul.f32 %v498, 0.5
    %v500 = vtanh.pop %v499
    %v501 = vmul.f32 %v500, 0.5
    %v502 = vadd.f32 %v501, 0.5
    %v503 = vtanh.pop %v498
    %v504 = vmul.f32 %v502, %v416
    %506 = vrot.lane.b32.xlu0 %v503, 64
    %v507 = vpop.permute.xlu0 %506
    %v509 = vmul.f32 %v502, %v507
    %511 = vrot.lane.b32.xlu0 %v509, 32
    %v512 = vpop.permute.xlu0 %511
    %v514 = vadd.f32 %v504, %v512
    %v515 = vtanh.pop %v514
    %517 = vrot.lane.b32.xlu0 %v515, 64
    %v518 = vpop.permute.xlu0 %517
    %v520 = vmul.f32 %v502, %v518
    %522 = vrot.lane.b32.xlu0 %v520, 32
    %v523 = vpop.permute.xlu0 %522
    %v524 = vsel %vm126, %v523, 0
    %526 = vmatprep.subr.mxu0 0.0
    %527 = vmatpush1.msra.mxu0 %v54
    %528 = vmatprep.subr.mxu0 0.0
    %529 = vmatpush1.msra.mxu0 %v55
    %530 = vmatprep.subr.mxu0 0.0
    %531 = vmatpush1.msra.mxu0 %v56
    %532 = vmatprep.subr.mxu0 0.0
    %533 = vmatpush1.msra.mxu0 %v57
    %534 = vmatprep.subr.mxu0 0.0
    %535 = vmatpush1.msra.mxu0 0.0
    %536 = vmatprep.subr.mxu0 0.0
    %537 = vmatpush1.msra.mxu0 0.0
    %538 = vmatprep.subr.mxu0 0.0
    %539 = vmatpush1.msra.mxu0 0.0
    %540 = vmatprep.subr.mxu0 0.0
    %541 = vmatpush1.msra.mxu0 0.0
    %542 = vmatprep.subr.mxu0 0.0
    %543 = vmatpush1.msra.mxu0 0.0
    %544 = vmatprep.subr.mxu0 0.0
    %545 = vmatpush1.msra.mxu0 0.0
    %546 = vmatprep.subr.mxu0 0.0
    %547 = vmatpush1.msra.mxu0 0.0
    %548 = vmatprep.subr.mxu0 0.0
    %549 = vmatpush1.msra.mxu0 0.0
    %550 = vmatprep.subr.mxu0 0.0
    %551 = vmatpush1.msra.mxu0 0.0
    %552 = vmatprep.subr.mxu0 0.0
    %553 = vmatpush1.msra.mxu0 0.0
    %554 = vmatprep.subr.mxu0 0.0
    %555 = vmatpush1.msra.mxu0 0.0
    %556 = vmatprep.subr.mxu0 0.0
    %557 = vmatpush1.msra.mxu0 0.0
    %558 = vmatprep.subr.mxu0 0.0
    %559 = vmatpush1.msra.mxu0 0.0
    %560 = vmatprep.subr.mxu0 0.0
    %561 = vmatpush1.msra.mxu0 0.0
    %562 = vmatprep.subr.mxu0 0.0
    %563 = vmatpush1.msra.mxu0 0.0
    %564 = vmatprep.subr.mxu0 0.0
    %565 = vmatpush1.msra.mxu0 0.0
    %566 = vmatprep.subr.mxu0 0.0
    %567 = vmatpush1.msra.mxu0 0.0
    %568 = vmatprep.subr.mxu0 0.0
    %569 = vmatpush1.msra.mxu0 0.0
    %570 = vmatprep.subr.mxu0 0.0
    %571 = vmatpush1.msra.mxu0 0.0
    %572 = vmatprep.subr.mxu0 0.0
    %573 = vmatpush1.msra.mxu0 0.0
    %574 = vmatprep.subr.mxu0 0.0
    %575 = vmatpush1.msra.mxu0 0.0
    %576 = vmatprep.subr.mxu0 0.0
    %577 = vmatpush1.msra.mxu0 0.0
    %578 = vmatprep.subr.mxu0 0.0
    %579 = vmatpush1.msra.mxu0 0.0
    %580 = vmatprep.subr.mxu0 0.0
    %581 = vmatpush1.msra.mxu0 0.0
    %582 = vmatprep.subr.mxu0 0.0
    %583 = vmatpush1.msra.mxu0 0.0
    %584 = vmatprep.subr.mxu0 0.0
    %585 = vmatpush1.msra.mxu0 0.0
    %586 = vmatprep.subr.mxu0 0.0
    %587 = vmatpush1.msra.mxu0 0.0
    %588 = vmatprep.subr.mxu0 0.0
    %589 = vmatpush1.msra.mxu0 0.0
    %590 = vmatprep.mubr.f32.mxu0 0.0
    %591 = vmatmul.mubr.f32.gmra.mrb[0].mxu0 %v524
    %v592 = vpop.f32.mrb[0].mxu0
    %v593 = vadd.f32 0.0, %v592
    %v594 = vpop.f32.mrb[0].mxu0
    %595 = vdwg.mxu0
    %v596 = vadd.f32 %v119, %v593
    %v597 = vmul.f32 %v596, 0.5
    %v598 = vtanh.pop %v597
    %v599 = vmul.f32 %v598, 0.5
    %v600 = vadd.f32 %v599, 0.5
    %v601 = vtanh.pop %v596
    %v602 = vmul.f32 %v600, %v514
    %604 = vrot.lane.b32.xlu0 %v601, 64
    %v605 = vpop.permute.xlu0 %604
    %v607 = vmul.f32 %v600, %v605
    %609 = vrot.lane.b32.xlu0 %v607, 32
    %v610 = vpop.permute.xlu0 %609
    %v612 = vadd.f32 %v602, %v610
    %v613 = vtanh.pop %v612
    %615 = vrot.lane.b32.xlu0 %v613, 64
    %v616 = vpop.permute.xlu0 %615
    %v618 = vmul.f32 %v600, %v616
    %620 = vrot.lane.b32.xlu0 %v618, 32
    %v621 = vpop.permute.xlu0 %620
    %v622 = vsel %vm126, %v621, 0
    %624 = vmatprep.subr.mxu0 0.0
    %625 = vmatpush1.msra.mxu0 %v54
    %626 = vmatprep.subr.mxu0 0.0
    %627 = vmatpush1.msra.mxu0 %v55
    %628 = vmatprep.subr.mxu0 0.0
    %629 = vmatpush1.msra.mxu0 %v56
    %630 = vmatprep.subr.mxu0 0.0
    %631 = vmatpush1.msra.mxu0 %v57
    %632 = vmatprep.subr.mxu0 0.0
    %633 = vmatpush1.msra.mxu0 0.0
    %634 = vmatprep.subr.mxu0 0.0
    %635 = vmatpush1.msra.mxu0 0.0
    %636 = vmatprep.subr.mxu0 0.0
    %637 = vmatpush1.msra.mxu0 0.0
    %638 = vmatprep.subr.mxu0 0.0
    %639 = vmatpush1.msra.mxu0 0.0
    %640 = vmatprep.subr.mxu0 0.0
    %641 = vmatpush1.msra.mxu0 0.0
    %642 = vmatprep.subr.mxu0 0.0
    %643 = vmatpush1.msra.mxu0 0.0
    %644 = vmatprep.subr.mxu0 0.0
    %645 = vmatpush1.msra.mxu0 0.0
    %646 = vmatprep.subr.mxu0 0.0
    %647 = vmatpush1.msra.mxu0 0.0
    %648 = vmatprep.subr.mxu0 0.0
    %649 = vmatpush1.msra.mxu0 0.0
    %650 = vmatprep.subr.mxu0 0.0
    %651 = vmatpush1.msra.mxu0 0.0
    %652 = vmatprep.subr.mxu0 0.0
    %653 = vmatpush1.msra.mxu0 0.0
    %654 = vmatprep.subr.mxu0 0.0
    %655 = vmatpush1.msra.mxu0 0.0
    %656 = vmatprep.subr.mxu0 0.0
    %657 = vmatpush1.msra.mxu0 0.0
    %658 = vmatprep.subr.mxu0 0.0
    %659 = vmatpush1.msra.mxu0 0.0
    %660 = vmatprep.subr.mxu0 0.0
    %661 = vmatpush1.msra.mxu0 0.0
    %662 = vmatprep.subr.mxu0 0.0
    %663 = vmatpush1.msra.mxu0 0.0
    %664 = vmatprep.subr.mxu0 0.0
    %665 = vmatpush1.msra.mxu0 0.0
    %666 = vmatprep.subr.mxu0 0.0
    %667 = vmatpush1.msra.mxu0 0.0
    %668 = vmatprep.subr.mxu0 0.0
    %669 = vmatpush1.msra.mxu0 0.0
    %670 = vmatprep.subr.mxu0 0.0
    %671 = vmatpush1.msra.mxu0 0.0
    %672 = vmatprep.subr.mxu0 0.0
    %673 = vmatpush1.msra.mxu0 0.0
    %674 = vmatprep.subr.mxu0 0.0
    %675 = vmatpush1.msra.mxu0 0.0
    %676 = vmatprep.subr.mxu0 0.0
    %677 = vmatpush1.msra.mxu0 0.0
    %678 = vmatprep.subr.mxu0 0.0
    %679 = vmatpush1.msra.mxu0 0.0
    %680 = vmatprep.subr.mxu0 0.0
    %681 = vmatpush1.msra.mxu0 0.0
    %682 = vmatprep.subr.mxu0 0.0
    %683 = vmatpush1.msra.mxu0 0.0
    %684 = vmatprep.subr.mxu0 0.0
    %685 = vmatpush1.msra.mxu0 0.0
    %686 = vmatprep.subr.mxu0 0.0
    %687 = vmatpush1.msra.mxu0 0.0
    %688 = vmatprep.mubr.f32.mxu0 0.0
    %689 = vmatmul.mubr.f32.gmra.mrb[0].mxu0 %v622
    %v690 = vpop.f32.mrb[0].mxu0
    %v691 = vadd.f32 0.0, %v690
    %v692 = vpop.f32.mrb[0].mxu0
    %693 = vdwg.mxu0
    %v694 = vadd.f32 %v120, %v691
    %v695 = vmul.f32 %v694, 0.5
    %v696 = vtanh.pop %v695
    %v697 = vmul.f32 %v696, 0.5
    %v698 = vadd.f32 %v697, 0.5
    %v699 = vtanh.pop %v694
    %v700 = vmul.f32 %v698, %v612
    %702 = vrot.lane.b32.xlu0 %v699, 64
    %v703 = vpop.permute.xlu0 %702
    %v705 = vmul.f32 %v698, %v703
    %707 = vrot.lane.b32.xlu0 %v705, 32
    %v708 = vpop.permute.xlu0 %707
    %v710 = vadd.f32 %v700, %v708
    %v711 = vtanh.pop %v710
    %713 = vrot.lane.b32.xlu0 %v711, 64
    %v714 = vpop.permute.xlu0 %713
    %v716 = vmul.f32 %v698, %v714
    %718 = vrot.lane.b32.xlu0 %v716, 32
    %v719 = vpop.permute.xlu0 %718
    %v720 = vsel %vm126, %v719, 0
    %722 = vmatprep.subr.mxu0 0.0
    %723 = vmatpush1.msra.mxu0 %v54
    %724 = vmatprep.subr.mxu0 0.0
    %725 = vmatpush1.msra.mxu0 %v55
    %726 = vmatprep.subr.mxu0 0.0
    %727 = vmatpush1.msra.mxu0 %v56
    %728 = vmatprep.subr.mxu0 0.0
    %729 = vmatpush1.msra.mxu0 %v57
    %730 = vmatprep.subr.mxu0 0.0
    %731 = vmatpush1.msra.mxu0 0.0
    %732 = vmatprep.subr.mxu0 0.0
    %733 = vmatpush1.msra.mxu0 0.0
    %734 = vmatprep.subr.mxu0 0.0
    %735 = vmatpush1.msra.mxu0 0.0
    %736 = vmatprep.subr.mxu0 0.0
    %737 = vmatpush1.msra.mxu0 0.0
    %738 = vmatprep.subr.mxu0 0.0
    %739 = vmatpush1.msra.mxu0 0.0
    %740 = vmatprep.subr.mxu0 0.0
    %741 = vmatpush1.msra.mxu0 0.0
    %742 = vmatprep.subr.mxu0 0.0
    %743 = vmatpush1.msra.mxu0 0.0
    %744 = vmatprep.subr.mxu0 0.0
    %745 = vmatpush1.msra.mxu0 0.0
    %746 = vmatprep.subr.mxu0 0.0
    %747 = vmatpush1.msra.mxu0 0.0
    %748 = vmatprep.subr.mxu0 0.0
    %749 = vmatpush1.msra.mxu0 0.0
    %750 = vmatprep.subr.mxu0 0.0
    %751 = vmatpush1.msra.mxu0 0.0
    %752 = vmatprep.subr.mxu0 0.0
    %753 = vmatpush1.msra.mxu0 0.0
    %754 = vmatprep.subr.mxu0 0.0
    %755 = vmatpush1.msra.mxu0 0.0
    %756 = vmatprep.subr.mxu0 0.0
    %757 = vmatpush1.msra.mxu0 0.0
    %758 = vmatprep.subr.mxu0 0.0
    %759 = vmatpush1.msra.mxu0 0.0
    %760 = vmatprep.subr.mxu0 0.0
    %761 = vmatpush1.msra.mxu0 0.0
    %762 = vmatprep.subr.mxu0 0.0
    %763 = vmatpush1.msra.mxu0 0.0
    %764 = vmatprep.subr.mxu0 0.0
    %765 = vmatpush1.msra.mxu0 0.0
    %766 = vmatprep.subr.mxu0 0.0
    %767 = vmatpush1.msra.mxu0 0.0
    %768 = vmatprep.subr.mxu0 0.0
    %769 = vmatpush1.msra.mxu0 0.0
    %770 = vmatprep.subr.mxu0 0.0
    %771 = vmatpush1.msra.mxu0 0.0
    %772 = vmatprep.subr.mxu0 0.0
    %773 = vmatpush1.msra.mxu0 0.0
    %774 = vmatprep.subr.mxu0 0.0
    %775 = vmatpush1.msra.mxu0 0.0
    %776 = vmatprep.subr.mxu0 0.0
    %777 = vmatpush1.msra.mxu0 0.0
    %778 = vmatprep.subr.mxu0 0.0
    %779 = vmatpush1.msra.mxu0 0.0
    %780 = vmatprep.subr.mxu0 0.0
    %781 = vmatpush1.msra.mxu0 0.0
    %782 = vmatprep.subr.mxu0 0.0
    %783 = vmatpush1.msra.mxu0 0.0
    %784 = vmatprep.subr.mxu0 0.0
    %785 = vmatpush1.msra.mxu0 0.0
    %786 = vmatprep.mubr.f32.mxu0 0.0
    %787 = vmatmul.mubr.f32.gmra.mrb[0].mxu0 %v720
    %v788 = vpop.f32.mrb[0].mxu0
    %v789 = vadd.f32 0.0, %v788
    %v790 = vpop.f32.mrb[0].mxu0
    %791 = vdwg.mxu0
    %v792 = vadd.f32 %v121, %v789
    %v793 = vmul.f32 %v792, 0.5
    %v794 = vtanh.pop %v793
    %v795 = vmul.f32 %v794, 0.5
    %v796 = vadd.f32 %v795, 0.5
    %v797 = vtanh.pop %v792
    %v798 = vmul.f32 %v796, %v710
    %800 = vrot.lane.b32.xlu0 %v797, 64
    %v801 = vpop.permute.xlu0 %800
    %v803 = vmul.f32 %v796, %v801
    %805 = vrot.lane.b32.xlu0 %v803, 32
    %v806 = vpop.permute.xlu0 %805
    %v808 = vadd.f32 %v798, %v806
    %v809 = vtanh.pop %v808
    %811 = vrot.lane.b32.xlu0 %v809, 64
    %v812 = vpop.permute.xlu0 %811
    %v814 = vmul.f32 %v796, %v812
    %816 = vrot.lane.b32.xlu0 %v814, 32
    %v817 = vpop.permute.xlu0 %816
    %v818 = vsel %vm126, %v817, 0
    %820 = vmatprep.subr.mxu0 0.0
    %821 = vmatpush1.msra.mxu0 %v54
    %822 = vmatprep.subr.mxu0 0.0
    %823 = vmatpush1.msra.mxu0 %v55
    %824 = vmatprep.subr.mxu0 0.0
    %825 = vmatpush1.msra.mxu0 %v56
    %826 = vmatprep.subr.mxu0 0.0
    %827 = vmatpush1.msra.mxu0 %v57
    %828 = vmatprep.subr.mxu0 0.0
    %829 = vmatpush1.msra.mxu0 0.0
    %830 = vmatprep.subr.mxu0 0.0
    %831 = vmatpush1.msra.mxu0 0.0
    %832 = vmatprep.subr.mxu0 0.0
    %833 = vmatpush1.msra.mxu0 0.0
    %834 = vmatprep.subr.mxu0 0.0
    %835 = vmatpush1.msra.mxu0 0.0
    %836 = vmatprep.subr.mxu0 0.0
    %837 = vmatpush1.msra.mxu0 0.0
    %838 = vmatprep.subr.mxu0 0.0
    %839 = vmatpush1.msra.mxu0 0.0
    %840 = vmatprep.subr.mxu0 0.0
    %841 = vmatpush1.msra.mxu0 0.0
    %842 = vmatprep.subr.mxu0 0.0
    %843 = vmatpush1.msra.mxu0 0.0
    %844 = vmatprep.subr.mxu0 0.0
    %845 = vmatpush1.msra.mxu0 0.0
    %846 = vmatprep.subr.mxu0 0.0
    %847 = vmatpush1.msra.mxu0 0.0
    %848 = vmatprep.subr.mxu0 0.0
    %849 = vmatpush1.msra.mxu0 0.0
    %850 = vmatprep.subr.mxu0 0.0
    %851 = vmatpush1.msra.mxu0 0.0
    %852 = vmatprep.subr.mxu0 0.0
    %853 = vmatpush1.msra.mxu0 0.0
    %854 = vmatprep.subr.mxu0 0.0
    %855 = vmatpush1.msra.mxu0 0.0
    %856 = vmatprep.subr.mxu0 0.0
    %857 = vmatpush1.msra.mxu0 0.0
    %858 = vmatprep.subr.mxu0 0.0
    %859 = vmatpush1.msra.mxu0 0.0
    %860 = vmatprep.subr.mxu0 0.0
    %861 = vmatpush1.msra.mxu0 0.0
    %862 = vmatprep.subr.mxu0 0.0
    %863 = vmatpush1.msra.mxu0 0.0
    %864 = vmatprep.subr.mxu0 0.0
    %865 = vmatpush1.msra.mxu0 0.0
    %866 = vmatprep.subr.mxu0 0.0
    %867 = vmatpush1.msra.mxu0 0.0
    %868 = vmatprep.subr.mxu0 0.0
    %869 = vmatpush1.msra.mxu0 0.0
    %870 = vmatprep.subr.mxu0 0.0
    %871 = vmatpush1.msra.mxu0 0.0
    %872 = vmatprep.subr.mxu0 0.0
    %873 = vmatpush1.msra.mxu0 0.0
    %874 = vmatprep.subr.mxu0 0.0
    %875 = vmatpush1.msra.mxu0 0.0
    %876 = vmatprep.subr.mxu0 0.0
    %877 = vmatpush1.msra.mxu0 0.0
    %878 = vmatprep.subr.mxu0 0.0
    %879 = vmatpush1.msra.mxu0 0.0
    %880 = vmatprep.subr.mxu0 0.0
    %881 = vmatpush1.msra.mxu0 0.0
    %882 = vmatprep.subr.mxu0 0.0
    %883 = vmatpush1.msra.mxu0 0.0
    %884 = vmatprep.mubr.f32.mxu0 0.0
    %885 = vmatmul.mubr.f32.gmra.mrb[0].mxu0 %v818
    %v886 = vpop.f32.mrb[0].mxu0
    %v887 = vadd.f32 0.0, %v886
    %v888 = vpop.f32.mrb[0].mxu0
    %889 = vdwg.mxu0
    %v890 = vadd.f32 %v122, %v887
    %v891 = vmul.f32 %v890, 0.5
    %v892 = vtanh.pop %v891
    %v893 = vmul.f32 %v892, 0.5
    %v894 = vadd.f32 %v893, 0.5
    %v895 = vtanh.pop %v890
    %v896 = vmul.f32 %v894, %v808
    %898 = vrot.lane.b32.xlu0 %v895, 64
    %v899 = vpop.permute.xlu0 %898
    %v901 = vmul.f32 %v894, %v899
    %903 = vrot.lane.b32.xlu0 %v901, 32
    %v904 = vpop.permute.xlu0 %903
    %v906 = vadd.f32 %v896, %v904
    %v907 = vtanh.pop %v906
    %909 = vrot.lane.b32.xlu0 %v907, 64
    %v910 = vpop.permute.xlu0 %909
    %v912 = vmul.f32 %v894, %v910
    %v913 = vld [vmem:[#allocation5] sm:$0xff]
    %v914 = vld [vmem:[#allocation5 + $0x8] sm:$0xff]
    %v915 = vld [vmem:[#allocation5 + $0x10] sm:$0xff]
    %v916 = vld [vmem:[#allocation5 + $0x18] sm:$0xff]
    %v917 = vld [vmem:[#allocation5 + $0x20] sm:$0x1]
    %v918 = vlaneseq
    %v919 = vshrl.u32 %v918, 7
    %v920 = vsub.s32 0, %v919
    %v921 = vrot.slane %v917, %v920
    %923 = vrot.lane.b32.xlu0 %v912, 32
    %v924 = vpop.permute.xlu0 %923
    %v925 = vsel %vm126, %v924, 0
    %927 = vmatprep.subr.mxu0 0.0
    %928 = vmatpush1.msra.mxu0 %v913
    %929 = vmatprep.subr.mxu0 0.0
    %930 = vmatpush1.msra.mxu0 %v914
    %931 = vmatprep.subr.mxu0 0.0
    %932 = vmatpush1.msra.mxu0 %v915
    %933 = vmatprep.subr.mxu0 0.0
    %934 = vmatpush1.msra.mxu0 %v916
    %935 = vmatprep.subr.mxu0 0.0
    %936 = vmatpush1.msra.mxu0 0.0
    %937 = vmatprep.subr.mxu0 0.0
    %938 = vmatpush1.msra.mxu0 0.0
    %939 = vmatprep.subr.mxu0 0.0
    %940 = vmatpush1.msra.mxu0 0.0
    %941 = vmatprep.subr.mxu0 0.0
    %942 = vmatpush1.msra.mxu0 0.0
    %943 = vmatprep.subr.mxu0 0.0
    %944 = vmatpush1.msra.mxu0 0.0
    %945 = vmatprep.subr.mxu0 0.0
    %946 = vmatpush1.msra.mxu0 0.0
    %947 = vmatprep.subr.mxu0 0.0
    %948 = vmatpush1.msra.mxu0 0.0
    %949 = vmatprep.subr.mxu0 0.0
    %950 = vmatpush1.msra.mxu0 0.0
    %951 = vmatprep.subr.mxu0 0.0
    %952 = vmatpush1.msra.mxu0 0.0
    %953 = vmatprep.subr.mxu0 0.0
    %954 = vmatpush1.msra.mxu0 0.0
    %955 = vmatprep.subr.mxu0 0.0
    %956 = vmatpush1.msra.mxu0 0.0
    %957 = vmatprep.subr.mxu0 0.0
    %958 = vmatpush1.msra.mxu0 0.0
    %959 = vmatprep.subr.mxu0 0.0
    %960 = vmatpush1.msra.mxu0 0.0
    %961 = vmatprep.subr.mxu0 0.0
    %962 = vmatpush1.msra.mxu0 0.0
    %963 = vmatprep.subr.mxu0 0.0
    %964 = vmatpush1.msra.mxu0 0.0
    %965 = vmatprep.subr.mxu0 0.0
    %966 = vmatpush1.msra.mxu0 0.0
    %967 = vmatprep.subr.mxu0 0.0
    %968 = vmatpush1.msra.mxu0 0.0
    %969 = vmatprep.subr.mxu0 0.0
    %970 = vmatpush1.msra.mxu0 0.0
    %971 = vmatprep.subr.mxu0 0.0
    %972 = vmatpush1.msra.mxu0 0.0
    %973 = vmatprep.subr.mxu0 0.0
    %974 = vmatpush1.msra.mxu0 0.0
    %975 = vmatprep.subr.mxu0 0.0
    %976 = vmatpush1.msra.mxu0 0.0
    %977 = vmatprep.subr.mxu0 0.0
    %978 = vmatpush1.msra.mxu0 0.0
    %979 = vmatprep.subr.mxu0 0.0
    %980 = vmatpush1.msra.mxu0 0.0
    %981 = vmatprep.subr.mxu0 0.0
    %982 = vmatpush1.msra.mxu0 0.0
    %983 = vmatprep.subr.mxu0 0.0
    %984 = vmatpush1.msra.mxu0 0.0
    %985 = vmatprep.subr.mxu0 0.0
    %986 = vmatpush1.msra.mxu0 0.0
    %987 = vmatprep.subr.mxu0 0.0
    %988 = vmatpush1.msra.mxu0 0.0
    %989 = vmatprep.subr.mxu0 0.0
    %990 = vmatpush1.msra.mxu0 0.0
    %991 = vmatprep.mubr.f32.mxu0 0.0
    %992 = vmatmul.mubr.f32.gmra.mrb[0].mxu0 %v925
    %v993 = vpop.f32.mrb[0].mxu0
    %v994 = vadd.f32 %v921, %v993
    %v995 = vpop.f32.mrb[0].mxu0
    %996 = vdwg.mxu0
    %997 = vst [vmem:[#allocation7] sm:$0x3] %v994
    // Predicated region
    $region26: #{tpu_custom_call.1} parent=1 // pred_check
      _
    $region27: #{tpu_custom_call.1} parent=1 // pred_check_branch
      %999 = sbr.rel (0) target = $region29
    $region28: #{tpu_custom_call.1} parent=1 // pred_region
      %s1001 = ssub.s32 32, 32
      %1002 = vsyncadd [#allocation4], %s1001
      %s1004 = sshll.u32 [#allocation7], 4
      %s1005 = int_to_ptr.vmem [resolvable:$true] %s1004
      %1007 = dma.vmem_to_hbm [thread:$0]  %s1005, 32, %s4, [#allocation4]
    $region29: #{tpu_custom_call.1} parent=1 // pred_fallthru
      _
    // Predicated region
    $region30: #{tpu_custom_call.1} parent=1 // pred_check
      _
    $region31: #{tpu_custom_call.1} parent=1 // pred_check_branch
      %1009 = sbr.rel (0) target = $region33
    $region32: #{tpu_custom_call.1} parent=1 // pred_region
      %1010 = dma.done [#allocation4], 32
    $region33: #{tpu_custom_call.1} parent=1 // pred_fallthru
      _
    %1011 = vsyncpa [#allocation3], 1
    %1012 = vsyncpa [#allocation6], 1
    %1013 = vsyncpa [#allocation4], 1

</llo_original>
